<compile_context>
chip_gen: v7x
topology: tpu7x:2x2x1
jax: 0.10.0
libtpu: 0.0.40
codegen_flags: <defaults>
</compile_context>

<pallas_src>
import functools

import jax
import jax.numpy as jnp
from jax.experimental import pallas as pl
from jax.experimental.pallas import tpu as pltpu

_LANE = 128


def _normalize_kernel(pc_ref, out_ref, *, n_valid, n_padded):
    """pc_ref / out_ref: (3, K, 128) — one point cloud in lane/sublane-dense layout.

    Points with flat index >= n_valid are zero padding and are masked out of the
    centroid and max-distance reductions (their output slots are sliced off in
    the wrapper).
    """
    x = pc_ref[...]
    xf = x if x.dtype == jnp.float32 else x.astype(jnp.float32)
    _, K, L = xf.shape

    if n_padded > n_valid:
        # flat point index of every (sublane, lane) slot
        idx = (jax.lax.broadcasted_iota(jnp.int32, (K, L), 0) * L
               + jax.lax.broadcasted_iota(jnp.int32, (K, L), 1))
        valid = idx < n_valid
        xs = jnp.where(valid[None, :, :], xf, 0.0)
    else:
        valid = None
        xs = xf

    # centroid = (sum over points) / n_valid  -> (3, 1, 1)
    row_sum = jnp.sum(xs, axis=2, keepdims=True)                          # (3, K, 1)
    centroid = jnp.sum(row_sum, axis=1, keepdims=True) * (1.0 / n_valid)  # (3, 1, 1)

    centered = xf - centroid                                              # (3, K, L)

    # max squared distance from centroid; sqrt deferred to one scalar rsqrt.
    sumsq = jnp.sum(centered * centered, axis=0)                          # (K, L)
    if valid is not None:
        sumsq = jnp.where(valid, sumsq, 0.0)  # distances >= 0, safe for max
    max_sq = jnp.max(sumsq)                                               # scalar

    # NOTE: max_sq == 0 (all points identical) -> NaN, same as the PyTorch reference.
    scale = jax.lax.rsqrt(max_sq)                                         # scalar EUP
    out_ref[...] = (centered * scale).astype(out_ref.dtype)


def normalize_pc_batched_pallas(pc):
    """pc: (B, 3, N) -> (B, 3, N); each cloud centered & scaled into the unit sphere."""
    assert pc.ndim == 3 and pc.shape[1] == 3, "expected (batch, 3, num_points)"
    B, C, N = pc.shape

    n_padded = pl.cdiv(N, _LANE) * _LANE
    pc_p = jnp.pad(pc, ((0, 0), (0, 0), (0, n_padded - N))) if n_padded != N else pc
    K = n_padded // _LANE
    x = pc_p.reshape(B, C, K, _LANE)  # free view: sublane+lane dense layout

    kernel = functools.partial(_normalize_kernel, n_valid=N, n_padded=n_padded)
    out = pl.pallas_call(
        kernel,
        out_shape=jax.ShapeDtypeStruct((B, C, K, _LANE), pc.dtype),
        grid=(B,),
        in_specs=[pl.BlockSpec((None, C, K, _LANE), lambda b: (b, 0, 0, 0))],
        out_specs=pl.BlockSpec((None, C, K, _LANE), lambda b: (b, 0, 0, 0)),
        compiler_params=pltpu.CompilerParams(
            dimension_semantics=("parallel",)),  # shards clouds across TCs on v7x
    )(x)

    out = out.reshape(B, C, n_padded)
    if n_padded != N:
        out = out[:, :, :N]
    return out


def normalize_pc_pallas(pc):
    """pc: (3, N) float array -> (3, N), matching the PyTorch `Normalize` module."""
    assert pc.ndim == 2 and pc.shape[0] == 3, "expected (3, num_points) point cloud"
    return normalize_pc_batched_pallas(pc[None])[0]


def normalize_pc_ref(pc):
    """Pure-JAX reference mirroring the PyTorch semantics (2-D, vmap-able)."""
    centroid = jnp.mean(pc, axis=-1, keepdims=True)
    centered = pc - centroid
    dists = jnp.sqrt(jnp.sum(centered ** 2, axis=0))
    return centered / jnp.max(dists)


if __name__ == "__main__":
    key = jax.random.PRNGKey(0)
    k1, k2, k3 = jax.random.split(key, 3)

    # 1) single cloud, lane/sublane-dense N (module-shaped input).
    pc = jax.random.normal(k1, (3, 1024), dtype=jnp.float32) * 4.0 + 1.5
    out = jax.block_until_ready(normalize_pc_pallas(pc))
    ref = normalize_pc_ref(pc)
    assert out.shape == pc.shape and out.dtype == pc.dtype
    assert jnp.allclose(out, ref, atol=1e-5, rtol=1e-5), "mismatch (N=1024)"

    # 2) single cloud with ragged N (exercises the in-kernel padding mask).
    pc2 = jax.random.normal(k2, (3, 200), dtype=jnp.float32) * 2.0 - 0.5
    out2 = jax.block_until_ready(normalize_pc_pallas(pc2))
    ref2 = normalize_pc_ref(pc2)
    assert out2.shape == pc2.shape
    assert jnp.allclose(out2, ref2, atol=1e-5, rtol=1e-5), "mismatch (N=200)"

    # 3) batched clouds, one per grid step ("parallel" batch axis).
    pcs = jax.random.normal(k3, (4, 3, 1024), dtype=jnp.float32) * 3.0 + 0.25
    outs = jax.block_until_ready(normalize_pc_batched_pallas(pcs))
    refs = jax.vmap(normalize_pc_ref)(pcs)
    assert outs.shape == pcs.shape
    assert jnp.allclose(outs, refs, atol=1e-5, rtol=1e-5), "mismatch (batched)"

    print("KERNEL_OK")
</pallas_src>

<mosaic_0001>
module attributes {stable_mosaic.version = 11 : i64} {
  func.func @_normalize_kernel(%arg0: i32, %arg1: memref<1x3x8x128xf32, #tpu.memory_space<vmem>>, %arg2: memref<1x3x8x128xf32, #tpu.memory_space<vmem>>) attributes {dimension_semantics = [#tpu.dimension_semantics<parallel>], iteration_bounds = array<i64: 1>, scalar_prefetch = 0 : i64, scratch_operands = 0 : i64, tpu.core_type = #tpu.core_type<tc>, window_params = [{transform_indices = @transform_0, window_bounds = array<i64: 1, 3, 8, 128>}, {transform_indices = @transform_1, window_bounds = array<i64: 1, 3, 8, 128>}]} {
    %c0 = arith.constant 0 : index
    %c0_0 = arith.constant 0 : index
    %c0_1 = arith.constant 0 : index
    %c0_2 = arith.constant 0 : index
    %0 = vector.load %arg1[%c0, %c0_0, %c0_1, %c0_2] : memref<1x3x8x128xf32, #tpu.memory_space<vmem>>, vector<1x3x8x128xf32>
    %1 = vector.shape_cast %0 : vector<1x3x8x128xf32> to vector<3x8x128xf32>
    %cst = arith.constant dense<0.000000e+00> : vector<3x8xf32>
    %2 = vector.multi_reduction <add>, %1, %cst [2] : vector<3x8x128xf32> to vector<3x8xf32>
    %3 = vector.shape_cast %2 : vector<3x8xf32> to vector<3x8x1xf32>
    %cst_3 = arith.constant dense<0.000000e+00> : vector<3x1xf32>
    %4 = vector.multi_reduction <add>, %3, %cst_3 [1] : vector<3x8x1xf32> to vector<3x1xf32>
    %5 = vector.shape_cast %4 : vector<3x1xf32> to vector<3x1x1xf32>
    %cst_4 = arith.constant 9.765625E-4 : f32
    %6 = vector.broadcast %cst_4 : f32 to vector<3x1x1xf32>
    %7 = arith.mulf %5, %6 : vector<3x1x1xf32>
    %8 = vector.broadcast %7 : vector<3x1x1xf32> to vector<3x8x128xf32>
    %9 = arith.subf %1, %8 : vector<3x8x128xf32>
    %10 = arith.mulf %9, %9 : vector<3x8x128xf32>
    %cst_5 = arith.constant dense<0.000000e+00> : vector<8x128xf32>
    %11 = vector.multi_reduction <add>, %10, %cst_5 [0] : vector<3x8x128xf32> to vector<8x128xf32>
    %12 = vector.shape_cast %11 : vector<8x128xf32> to vector<1x8x128xf32>
    %cst_6 = arith.constant dense<0xFF800000> : vector<1xf32>
    %13 = vector.multi_reduction <maximumf>, %12, %cst_6 [1, 2] : vector<1x8x128xf32> to vector<1xf32>
    %14 = vector.shape_cast %13 : vector<1xf32> to vector<1x1x1xf32>
    %15 = vector.extract %14[0, 0, 0] : f32 from vector<1x1x1xf32>
    %16 = math.rsqrt %15 : f32
    %17 = vector.broadcast %16 : f32 to vector<3x8x128xf32>
    %18 = arith.mulf %9, %17 : vector<3x8x128xf32>
    %c0_7 = arith.constant 0 : index
    %c0_8 = arith.constant 0 : index
    %c0_9 = arith.constant 0 : index
    %c0_10 = arith.constant 0 : index
    %19 = vector.load %arg2[%c0_7, %c0_8, %c0_9, %c0_10] : memref<1x3x8x128xf32, #tpu.memory_space<vmem>>, vector<1x3x8x128xf32>
    %20 = vector.shape_cast %19 : vector<1x3x8x128xf32> to vector<3x8x128xf32>
    %21 = vector.shape_cast %18 : vector<3x8x128xf32> to vector<1x3x8x128xf32>
    tpu.vector_store %arg2[%c0_7, %c0_8, %c0_9, %c0_10], %21 {strides = array<i32>} : memref<1x3x8x128xf32, #tpu.memory_space<vmem>>, vector<1x3x8x128xf32>,
    return
  }
  func.func @transform_0(%arg0: i32) -> (i32, i32, i32, i32) {
    %c0_i32 = arith.constant 0 : i32
    %c0_i32_0 = arith.constant 0 : i32
    %c0_i32_1 = arith.constant 0 : i32
    %c0_i32_2 = arith.constant 0 : i32
    return %arg0, %c0_i32, %c0_i32_0, %c0_i32_1 : i32, i32, i32, i32
  }
  func.func @transform_1(%arg0: i32) -> (i32, i32, i32, i32) {
    %c0_i32 = arith.constant 0 : i32
    %c0_i32_0 = arith.constant 0 : i32
    %c0_i32_1 = arith.constant 0 : i32
    %c0_i32_2 = arith.constant 0 : i32
    return %arg0, %c0_i32, %c0_i32_0, %c0_i32_1 : i32, i32, i32, i32
  }
}

</mosaic_0001>

<llo_original>
// kernel: tpu_custom_call.1
$region0: #{tpu_custom_call.1}
  #allocation0 [shape = 'u32[]', space=smem, size = 0x4, offset = 0x4, fixed_abs, tag = 'smem constant byte address 0x4 - core index']
  #allocation1 [shape = 'u32[144,128]{1,0:T(1,128)}', space=vmem, size = 0x12000, scoped, tag = 'internal scratch']
  %s0 = inlined_call_operand.hbm [shape: f32[1,3,8,128], index: 0, kind: input, shape index: {}]
  %s1 = inlined_call_operand.hbm [shape: f32[1,3,8,128], index: 1, kind: output, shape index: {}]
  %s2 = sld [smem:[#allocation0]]
  $region18: #{tpu_custom_call.1} parent=0
    _
  %s4 = ssub.s32 1, %s2
  %s5 = scalar_select 0, %s4, %s2
  $region1: #{tpu_custom_call.1} parent=0
    #allocation2 [shape = 'u8[12288]{0}', space=vmem, size = 0x3000, scoped, tag = 'input window, operand 0, single buffered']
    #allocation3 [shape = 's32[1]{0}', space=sflag, size = 0x4, scoped, tag = 'scoped memory for tpu_custom_call.1']
    #allocation4 [shape = 's32[1]{0}', space=sflag, size = 0x4, scoped, tag = 'scoped memory for tpu_custom_call.1']
    #allocation5 [shape = 'u8[12288]{0}', space=vmem, size = 0x3000, scoped, tag = 'output window, operand 0, single buffered']
    %6 = vsyncpa [#allocation3], 0
    %7 = vsyncpa [#allocation4], 0
    // Predicated region
    $region2: #{tpu_custom_call.1} parent=1 // pred_check
      _
    $region3: #{tpu_custom_call.1} parent=1 // pred_check_branch
      %9 = sbr.rel (0) target = $region5
    $region4: #{tpu_custom_call.1} parent=1 // pred_region
      %s11 = ssub.s32 384, 384
      %12 = vsyncadd [#allocation3], %s11
      %s13 = sshll.u32 [#allocation2], 4
      %s14 = int_to_ptr.vmem [resolvable:$true] %s13
      %19 = dma.hbm_to_vmem [thread:$0]  %s0, 384, %s14, [#allocation3], 128, 128, 8
    $region5: #{tpu_custom_call.1} parent=1 // pred_fallthru
      _
    // Predicated region
    $region6: #{tpu_custom_call.1} parent=1 // pred_check
      _
    $region7: #{tpu_custom_call.1} parent=1 // pred_check_branch
      %21 = sbr.rel (0) target = $region9
    $region8: #{tpu_custom_call.1} parent=1 // pred_region
      %22 = dma.done [#allocation3], 384
    $region9: #{tpu_custom_call.1} parent=1 // pred_fallthru
      _
    %v23 = vld [vmem:[#allocation2] sm:$0xff]
    %v24 = vld [vmem:[#allocation2 + $0x8] sm:$0xff]
    %v25 = vld [vmem:[#allocation2 + $0x10] sm:$0xff]
    %26 = vadd.xlane.f32.xlu0 %v23
    %v27 = vpop.xlane.xlu0 %26
    %28 = vadd.xlane.f32.xlu0 %v24
    %v29 = vpop.xlane.xlu0 %28
    %30 = vadd.xlane.f32.xlu0 %v25
    %v31 = vpop.xlane.xlu0 %30
    %v32 = vrot.slane %v27, 4
    %v33 = vadd.f32 %v27, %v32
    %v34 = vrot.slane %v33, 2
    %v35 = vadd.f32 %v33, %v34
    %v36 = vrot.slane %v35, 1
    %v37 = vadd.f32 %v35, %v36
    %v38 = vrot.slane %v29, 4
    %v39 = vadd.f32 %v29, %v38
    %v40 = vrot.slane %v39, 2
    %v41 = vadd.f32 %v39, %v40
    %v42 = vrot.slane %v41, 1
    %v43 = vadd.f32 %v41, %v42
    %v44 = vrot.slane %v31, 4
    %v45 = vadd.f32 %v31, %v44
    %v46 = vrot.slane %v45, 2
    %v47 = vadd.f32 %v45, %v46
    %v48 = vrot.slane %v47, 1
    %v49 = vadd.f32 %v47, %v48
    %v50 = vmul.f32 %v37, 0.0009765625
    %v51 = vmul.f32 %v43, 0.0009765625
    %v52 = vmul.f32 %v49, 0.0009765625
    %v53 = vsub.f32 %v23, %v50
    %v54 = vsub.f32 %v24, %v51
    %v55 = vsub.f32 %v25, %v52
    %v56 = vmul.f32 %v53, %v53
    %v57 = vmul.f32 %v54, %v54
    %v58 = vmul.f32 %v55, %v55
    %v59 = vadd.f32 %v56, %v57
    %v60 = vadd.f32 %v59, %v58
    %61 = vmax.xlane.f32.xlu0 %v60
    %v62 = vpop.xlane.xlu0 %61
    %v63 = vrot.slane %v62, 4
    %v64 = vmax.f32 %v62, %v63
    %v65 = vrot.slane %v64, 2
    %v66 = vmax.f32 %v64, %v65
    %v67 = vrot.slane %v66, 1
    %v68 = vmax.f32 %v66, %v67
    %s69 = vtos %v68
    %v70 = vstv %s69
    %v71 = vrsqrt.pop %v70
    %s72 = vtos %v71
    %v73 = vstv %s72
    %v74 = vmul.f32 %v53, %v73
    %v75 = vmul.f32 %v54, %v73
    %v76 = vmul.f32 %v55, %v73
    %77 = vst [vmem:[#allocation5] sm:$0xff] %v74
    %78 = vst [vmem:[#allocation5 + $0x8] sm:$0xff] %v75
    %79 = vst [vmem:[#allocation5 + $0x10] sm:$0xff] %v76
    // Predicated region
    $region10: #{tpu_custom_call.1} parent=1 // pred_check
      _
    $region11: #{tpu_custom_call.1} parent=1 // pred_check_branch
      %81 = sbr.rel (0) target = $region13
    $region12: #{tpu_custom_call.1} parent=1 // pred_region
      %s83 = ssub.s32 384, 384
      %84 = vsyncadd [#allocation4], %s83
      %s85 = sshll.u32 [#allocation5], 4
      %s86 = int_to_ptr.vmem [resolvable:$true] %s85
      %91 = dma.vmem_to_hbm [thread:$0]  %s86, 384, %s1, [#allocation4], 128, 128, 8
    $region13: #{tpu_custom_call.1} parent=1 // pred_fallthru
      _
    // Predicated region
    $region14: #{tpu_custom_call.1} parent=1 // pred_check
      _
    $region15: #{tpu_custom_call.1} parent=1 // pred_check_branch
      %93 = sbr.rel (0) target = $region17
    $region16: #{tpu_custom_call.1} parent=1 // pred_region
      %94 = dma.done [#allocation4], 384
    $region17: #{tpu_custom_call.1} parent=1 // pred_fallthru
      _
    %95 = vsyncpa [#allocation3], 1
    %96 = vsyncpa [#allocation4], 1

</llo_original>
